<compile_context>
chip_gen: v7x
topology: tpu7x:2x2x1
jax: 0.10.0
libtpu: 0.0.40
codegen_flags: <defaults>
</compile_context>

<pallas_src>
import jax
import jax.numpy as jnp
from jax.experimental import pallas as pl
from jax.experimental.pallas import tpu as pltpu


def attack_mlp_kernel(x_ref, w1_ref, b1_ref, w2_ref, b2_ref, o_ref):
    # First linear on the MXU: (TB, F) @ (F, H), f32 accumulation.
    h = jnp.dot(x_ref[...], w1_ref[...], preferred_element_type=jnp.float32)
    h = jnp.maximum(h + b1_ref[...], 0.0)          # bias + ReLU on the VPU (f32)
    # Second linear: (TB, H) @ (H, C); cast h to the weight dtype (no-op for f32).
    out = jnp.dot(h.astype(w2_ref.dtype), w2_ref[...],
                  preferred_element_type=jnp.float32)
    o_ref[...] = (out + b2_ref[...]).astype(o_ref.dtype)


def attack_model_forward(x, w1, b1, w2, b2, *, batch_tile=1024):
    """Fused forward pass of AttackModel.

    x:  (B, input_size) float32
    w1: (input_size, hidden_size) float32   (transposed vs. PyTorch)
    b1: (hidden_size,) or (1, hidden_size) float32
    w2: (hidden_size, out_classes) float32  (transposed vs. PyTorch)
    b2: (out_classes,) or (1, out_classes) float32
    returns (B, out_classes) float32
    """
    B, F = x.shape
    H = w1.shape[1]
    C = w2.shape[1]
    b1 = b1.reshape(1, H)
    b2 = b2.reshape(1, C)

    if B <= batch_tile:
        # Small batch: single block, no grid -> no pipeline prologue/epilogue
        # or per-step overhead; all operands sit in VMEM for the whole call.
        return pl.pallas_call(
            attack_mlp_kernel,
            out_shape=jax.ShapeDtypeStruct((B, C), jnp.float32),
            in_specs=[pl.BlockSpec(memory_space=pltpu.MemorySpace.VMEM)] * 5,
            out_specs=pl.BlockSpec(memory_space=pltpu.MemorySpace.VMEM),
        )(x, w1, b1, w2, b2)

    # Large batch: tile the batch with a cdiv grid (last block may be partial;
    # Pallas drops out-of-range output rows).  Weights/biases stay
    # VMEM-resident across grid steps (constant index_map); x and the narrow
    # (B, C) output stream through the pipeline.  "parallel" lets v7x shard
    # the batch axis across its two TensorCores (harmless on v5e/v6e).
    return pl.pallas_call(
        attack_mlp_kernel,
        out_shape=jax.ShapeDtypeStruct((B, C), jnp.float32),
        grid=(pl.cdiv(B, batch_tile),),
        in_specs=[
            pl.BlockSpec((batch_tile, F), lambda i: (i, 0)),  # last dim = full F
            pl.BlockSpec((F, H), lambda i: (0, 0)),           # full-array block
            pl.BlockSpec((1, H), lambda i: (0, 0)),
            pl.BlockSpec((H, C), lambda i: (0, 0)),
            pl.BlockSpec((1, C), lambda i: (0, 0)),
        ],
        out_specs=pl.BlockSpec((batch_tile, C), lambda i: (i, 0)),
        compiler_params=pltpu.CompilerParams(
            dimension_semantics=("parallel",)),
    )(x, w1, b1, w2, b2)


def init_params(key, input_size=100, hidden_size=64, out_classes=2):
    """Deterministic synthetic init (shapes match the nn.Linear layers)."""
    k1, k2, k3, k4 = jax.random.split(key, 4)
    # PyTorch nn.Linear stores weight as (out, in); we store transposed.
    w1 = jax.random.normal(k1, (input_size, hidden_size), jnp.float32) * 0.05
    b1 = jax.random.normal(k2, (1, hidden_size), jnp.float32) * 0.05
    w2 = jax.random.normal(k3, (hidden_size, out_classes), jnp.float32) * 0.05
    b2 = jax.random.normal(k4, (1, out_classes), jnp.float32) * 0.05
    return w1, b1, w2, b2


if __name__ == "__main__":
    key = jax.random.PRNGKey(0)
    k_x, k_p, k_x2 = jax.random.split(key, 3)

    INPUT_SIZE, HIDDEN, OUT = 100, 64, 2
    w1, b1, w2, b2 = init_params(k_p, INPUT_SIZE, HIDDEN, OUT)

    def ref_fwd(xx):
        return jnp.maximum(xx @ w1 + b1, 0.0) @ w2 + b2

    # 1) Small batch -> single-block, no-grid path.
    B_small = 8
    x_small = jax.random.normal(k_x, (B_small, INPUT_SIZE), jnp.float32)
    out_small = jax.block_until_ready(
        attack_model_forward(x_small, w1, b1, w2, b2))
    assert out_small.shape == (B_small, OUT)
    assert jnp.allclose(out_small, ref_fwd(x_small), atol=1e-5, rtol=1e-5)

    # 2) Larger batch -> batch-tiled grid path with VMEM-resident weights and
    #    a partial last block (1100 rows, tile 1024) to exercise boundary
    #    handling without any wrapper-side padding.
    B_big = 1100
    x_big = jax.random.normal(k_x2, (B_big, INPUT_SIZE), jnp.float32)
    out_big = jax.block_until_ready(
        attack_model_forward(x_big, w1, b1, w2, b2, batch_tile=1024))
    assert out_big.shape == (B_big, OUT)
    assert jnp.allclose(out_big, ref_fwd(x_big), atol=1e-4, rtol=1e-4)

    print("KERNEL_OK")
</pallas_src>

<mosaic_0001>
module attributes {stable_mosaic.version = 11 : i64} {
  func.func @attack_mlp_kernel(%arg0: memref<8x100xf32, #tpu.memory_space<vmem>>, %arg1: memref<100x64xf32, #tpu.memory_space<vmem>>, %arg2: memref<1x64xf32, #tpu.memory_space<vmem>>, %arg3: memref<64x2xf32, #tpu.memory_space<vmem>>, %arg4: memref<1x2xf32, #tpu.memory_space<vmem>>, %arg5: memref<8x2xf32, #tpu.memory_space<vmem>>) attributes {dimension_semantics = [], scalar_prefetch = 0 : i64, scratch_operands = 0 : i64, tpu.core_type = #tpu.core_type<tc>} {
    %c0 = arith.constant 0 : index
    %c0_0 = arith.constant 0 : index
    %0 = vector.load %arg0[%c0, %c0_0] : memref<8x100xf32, #tpu.memory_space<vmem>>, vector<8x100xf32>
    %c0_1 = arith.constant 0 : index
    %c0_2 = arith.constant 0 : index
    %1 = vector.load %arg1[%c0_1, %c0_2] : memref<100x64xf32, #tpu.memory_space<vmem>>, vector<100x64xf32>
    %cst = arith.constant dense<0.000000e+00> : vector<8x64xf32>
    %2 = tpu.matmul %0, %1, %cst {dimension_numbers = #tpu.dot_dimension_numbers<[1], [0], [0], [1], [0, 0, 1, 1], [], []>} : vector<8x100xf32>, vector<100x64xf32>, vector<8x64xf32> -> vector<8x64xf32>
    %c0_3 = arith.constant 0 : index
    %c0_4 = arith.constant 0 : index
    %3 = vector.load %arg2[%c0_3, %c0_4] : memref<1x64xf32, #tpu.memory_space<vmem>>, vector<1x64xf32>
    %4 = vector.broadcast %3 : vector<1x64xf32> to vector<8x64xf32>
    %5 = arith.addf %2, %4 : vector<8x64xf32>
    %cst_5 = arith.constant 0.000000e+00 : f32
    %6 = vector.broadcast %cst_5 : f32 to vector<8x64xf32>
    %7 = arith.maximumf %5, %6 : vector<8x64xf32>
    %c0_6 = arith.constant 0 : index
    %c0_7 = arith.constant 0 : index
    %8 = vector.load %arg3[%c0_6, %c0_7] : memref<64x2xf32, #tpu.memory_space<vmem>>, vector<64x2xf32>
    %cst_8 = arith.constant dense<0.000000e+00> : vector<8x2xf32>
    %9 = tpu.matmul %7, %8, %cst_8 {dimension_numbers = #tpu.dot_dimension_numbers<[1], [0], [0], [1], [0, 0, 1, 1], [], []>} : vector<8x64xf32>, vector<64x2xf32>, vector<8x2xf32> -> vector<8x2xf32>
    %c0_9 = arith.constant 0 : index
    %c0_10 = arith.constant 0 : index
    %10 = vector.load %arg4[%c0_9, %c0_10] : memref<1x2xf32, #tpu.memory_space<vmem>>, vector<1x2xf32>
    %11 = vector.broadcast %10 : vector<1x2xf32> to vector<8x2xf32>
    %12 = arith.addf %9, %11 : vector<8x2xf32>
    %c0_11 = arith.constant 0 : index
    %c0_12 = arith.constant 0 : index
    %13 = vector.load %arg5[%c0_11, %c0_12] : memref<8x2xf32, #tpu.memory_space<vmem>>, vector<8x2xf32>
    tpu.vector_store %arg5[%c0_11, %c0_12], %12 {strides = array<i32>} : memref<8x2xf32, #tpu.memory_space<vmem>>, vector<8x2xf32>,
    return
  }
}

</mosaic_0001>

<llo_original>
// kernel: tpu_custom_call.1
$region0: #{tpu_custom_call.1}
  #allocation0 [shape = 'u32[]', space=smem, size = 0x4, offset = 0x4, fixed_abs, tag = 'smem constant byte address 0x4 - core index']
  #allocation1 [shape = 'u32[144,128]{1,0:T(1,128)}', space=vmem, size = 0x12000, scoped, tag = 'internal scratch']
  %s0 = inlined_call_operand.vmem [shape: f32[8,100], index: 0, kind: input, shape index: {}]
  %s1 = inlined_call_operand.vmem [shape: f32[100,64], index: 1, kind: input, shape index: {}]
  %s2 = inlined_call_operand.vmem [shape: f32[1,64], index: 2, kind: input, shape index: {}]
  %s3 = inlined_call_operand.vmem [shape: f32[64,2], index: 3, kind: input, shape index: {}]
  %s4 = inlined_call_operand.vmem [shape: f32[1,2], index: 4, kind: input, shape index: {}]
  %s5 = inlined_call_operand.vmem [shape: f32[8,2], index: 5, kind: output, shape index: {}]
  %s6 = sld [smem:[#allocation0]]
  $region30: #{tpu_custom_call.1} parent=0
    _
  %s8 = ssub.s32 1, %s6
  %s9 = scalar_select 0, %s8, %s6
  // Predicated region
  $region2: #{tpu_custom_call.1} parent=0 // pred_check
    _
  $region3: #{tpu_custom_call.1} parent=0 // pred_check_branch
    %11 = sbr.rel (0) target = $region5
  $region4: #{tpu_custom_call.1} parent=0 // pred_region
    _
  $region5: #{tpu_custom_call.1} parent=0 // pred_fallthru
    _
  // Predicated region
  $region6: #{tpu_custom_call.1} parent=0 // pred_check
    _
  $region7: #{tpu_custom_call.1} parent=0 // pred_check_branch
    %13 = sbr.rel (0) target = $region9
  $region8: #{tpu_custom_call.1} parent=0 // pred_region
    _
  $region9: #{tpu_custom_call.1} parent=0 // pred_fallthru
    _
  // Predicated region
  $region10: #{tpu_custom_call.1} parent=0 // pred_check
    _
  $region11: #{tpu_custom_call.1} parent=0 // pred_check_branch
    %15 = sbr.rel (0) target = $region13
  $region12: #{tpu_custom_call.1} parent=0 // pred_region
    _
  $region13: #{tpu_custom_call.1} parent=0 // pred_fallthru
    _
  // Predicated region
  $region14: #{tpu_custom_call.1} parent=0 // pred_check
    _
  $region15: #{tpu_custom_call.1} parent=0 // pred_check_branch
    %17 = sbr.rel (0) target = $region17
  $region16: #{tpu_custom_call.1} parent=0 // pred_region
    _
  $region17: #{tpu_custom_call.1} parent=0 // pred_fallthru
    _
  // Predicated region
  $region18: #{tpu_custom_call.1} parent=0 // pred_check
    _
  $region19: #{tpu_custom_call.1} parent=0 // pred_check_branch
    %19 = sbr.rel (0) target = $region21
  $region20: #{tpu_custom_call.1} parent=0 // pred_region
    _
  $region21: #{tpu_custom_call.1} parent=0 // pred_fallthru
    _
  %v20 = vld [vmem:[%s0] sm:$0xff]
  %v21 = vld [vmem:[%s1] sm:$0xff]
  %v22 = vld [vmem:[%s1 + $0x8] sm:$0xff]
  %v23 = vld [vmem:[%s1 + $0x10] sm:$0xff]
  %v24 = vld [vmem:[%s1 + $0x18] sm:$0xff]
  %v25 = vld [vmem:[%s1 + $0x20] sm:$0xff]
  %v26 = vld [vmem:[%s1 + $0x28] sm:$0xff]
  %v27 = vld [vmem:[%s1 + $0x30] sm:$0xff]
  %v28 = vld [vmem:[%s1 + $0x38] sm:$0xff]
  %v29 = vld [vmem:[%s1 + $0x40] sm:$0xff]
  %v30 = vld [vmem:[%s1 + $0x48] sm:$0xff]
  %v31 = vld [vmem:[%s1 + $0x50] sm:$0xff]
  %v32 = vld [vmem:[%s1 + $0x58] sm:$0xff]
  %v33 = vld [vmem:[%s1 + $0x60] sm:$0xf]
  %v34 = vld [vmem:[%s2] sm:$0x1]
  %v36 = vlaneseq
  %v37 = vshrl.u32 %v36, 7
  %v38 = vsub.s32 0, %v37
  %v39 = vrot.slane %v34, %v38
  %vm41 = vcmask 818176
  %v43 = vsel %vm41, %v20, 0
  %vm45 = vcmask 1043456
  %v47 = vsel %vm45, %v33, 0
  %49 = vmatprep.subr.mxu0 0.0
  %50 = vmatpush1.msra.mxu0 %v21
  %51 = vmatprep.subr.mxu0 0.0
  %52 = vmatpush1.msra.mxu0 %v22
  %53 = vmatprep.subr.mxu0 0.0
  %54 = vmatpush1.msra.mxu0 %v23
  %55 = vmatprep.subr.mxu0 0.0
  %56 = vmatpush1.msra.mxu0 %v24
  %57 = vmatprep.subr.mxu0 0.0
  %58 = vmatpush1.msra.mxu0 %v25
  %59 = vmatprep.subr.mxu0 0.0
  %60 = vmatpush1.msra.mxu0 %v26
  %61 = vmatprep.subr.mxu0 0.0
  %62 = vmatpush1.msra.mxu0 %v27
  %63 = vmatprep.subr.mxu0 0.0
  %64 = vmatpush1.msra.mxu0 %v28
  %65 = vmatprep.subr.mxu0 0.0
  %66 = vmatpush1.msra.mxu0 %v29
  %67 = vmatprep.subr.mxu0 0.0
  %68 = vmatpush1.msra.mxu0 %v30
  %69 = vmatprep.subr.mxu0 0.0
  %70 = vmatpush1.msra.mxu0 %v31
  %71 = vmatprep.subr.mxu0 0.0
  %72 = vmatpush1.msra.mxu0 %v32
  %73 = vmatprep.subr.mxu0 0.0
  %74 = vmatpush1.msra.mxu0 %v47
  %75 = vmatprep.subr.mxu0 0.0
  %76 = vmatpush1.msra.mxu0 0.0
  %77 = vmatprep.subr.mxu0 0.0
  %78 = vmatpush1.msra.mxu0 0.0
  %79 = vmatprep.subr.mxu0 0.0
  %80 = vmatpush1.msra.mxu0 0.0
  %81 = vmatprep.subr.mxu0 0.0
  %82 = vmatpush1.msra.mxu0 0.0
  %83 = vmatprep.subr.mxu0 0.0
  %84 = vmatpush1.msra.mxu0 0.0
  %85 = vmatprep.subr.mxu0 0.0
  %86 = vmatpush1.msra.mxu0 0.0
  %87 = vmatprep.subr.mxu0 0.0
  %88 = vmatpush1.msra.mxu0 0.0
  %89 = vmatprep.subr.mxu0 0.0
  %90 = vmatpush1.msra.mxu0 0.0
  %91 = vmatprep.subr.mxu0 0.0
  %92 = vmatpush1.msra.mxu0 0.0
  %93 = vmatprep.subr.mxu0 0.0
  %94 = vmatpush1.msra.mxu0 0.0
  %95 = vmatprep.subr.mxu0 0.0
  %96 = vmatpush1.msra.mxu0 0.0
  %97 = vmatprep.subr.mxu0 0.0
  %98 = vmatpush1.msra.mxu0 0.0
  %99 = vmatprep.subr.mxu0 0.0
  %100 = vmatpush1.msra.mxu0 0.0
  %101 = vmatprep.subr.mxu0 0.0
  %102 = vmatpush1.msra.mxu0 0.0
  %103 = vmatprep.subr.mxu0 0.0
  %104 = vmatpush1.msra.mxu0 0.0
  %105 = vmatprep.subr.mxu0 0.0
  %106 = vmatpush1.msra.mxu0 0.0
  %107 = vmatprep.subr.mxu0 0.0
  %108 = vmatpush1.msra.mxu0 0.0
  %109 = vmatprep.subr.mxu0 0.0
  %110 = vmatpush1.msra.mxu0 0.0
  %111 = vmatprep.subr.mxu0 0.0
  %112 = vmatpush1.msra.mxu0 0.0
  %113 = vmatprep.mubr.f32.mxu0 0.0
  %114 = vmatmul.mubr.f32.gmra.mrb[0].mxu0 %v43
  %v115 = vpop.f32.mrb[0].mxu0
  %v116 = vadd.f32 %v39, %v115
  %v117 = vpop.f32.mrb[0].mxu0
  %118 = vdwg.mxu0
  %v119 = vmax.f32 %v116, 0.0
  %v120 = vld [vmem:[%s3] sm:$0xff]
  %v121 = vld [vmem:[%s3 + $0x8] sm:$0xff]
  %v122 = vld [vmem:[%s3 + $0x10] sm:$0xff]
  %v123 = vld [vmem:[%s3 + $0x18] sm:$0xff]
  %v124 = vld [vmem:[%s3 + $0x20] sm:$0xff]
  %v125 = vld [vmem:[%s3 + $0x28] sm:$0xff]
  %v126 = vld [vmem:[%s3 + $0x30] sm:$0xff]
  %v127 = vld [vmem:[%s3 + $0x38] sm:$0xff]
  %v128 = vld [vmem:[%s4] sm:$0x1]
  %v130 = vlaneseq
  %v131 = vshrl.u32 %v130, 7
  %v132 = vsub.s32 0, %v131
  %v133 = vrot.slane %v128, %v132
  %vm135 = vcmask 523264
  %v137 = vsel %vm135, %v119, 0
  %139 = vmatprep.subr.mxu0 0.0
  %140 = vmatpush1.msra.mxu0 %v120
  %141 = vmatprep.subr.mxu0 0.0
  %142 = vmatpush1.msra.mxu0 %v121
  %143 = vmatprep.subr.mxu0 0.0
  %144 = vmatpush1.msra.mxu0 %v122
  %145 = vmatprep.subr.mxu0 0.0
  %146 = vmatpush1.msra.mxu0 %v123
  %147 = vmatprep.subr.mxu0 0.0
  %148 = vmatpush1.msra.mxu0 %v124
  %149 = vmatprep.subr.mxu0 0.0
  %150 = vmatpush1.msra.mxu0 %v125
  %151 = vmatprep.subr.mxu0 0.0
  %152 = vmatpush1.msra.mxu0 %v126
  %153 = vmatprep.subr.mxu0 0.0
  %154 = vmatpush1.msra.mxu0 %v127
  %155 = vmatprep.subr.mxu0 0.0
  %156 = vmatpush1.msra.mxu0 0.0
  %157 = vmatprep.subr.mxu0 0.0
  %158 = vmatpush1.msra.mxu0 0.0
  %159 = vmatprep.subr.mxu0 0.0
  %160 = vmatpush1.msra.mxu0 0.0
  %161 = vmatprep.subr.mxu0 0.0
  %162 = vmatpush1.msra.mxu0 0.0
  %163 = vmatprep.subr.mxu0 0.0
  %164 = vmatpush1.msra.mxu0 0.0
  %165 = vmatprep.subr.mxu0 0.0
  %166 = vmatpush1.msra.mxu0 0.0
  %167 = vmatprep.subr.mxu0 0.0
  %168 = vmatpush1.msra.mxu0 0.0
  %169 = vmatprep.subr.mxu0 0.0
  %170 = vmatpush1.msra.mxu0 0.0
  %171 = vmatprep.subr.mxu0 0.0
  %172 = vmatpush1.msra.mxu0 0.0
  %173 = vmatprep.subr.mxu0 0.0
  %174 = vmatpush1.msra.mxu0 0.0
  %175 = vmatprep.subr.mxu0 0.0
  %176 = vmatpush1.msra.mxu0 0.0
  %177 = vmatprep.subr.mxu0 0.0
  %178 = vmatpush1.msra.mxu0 0.0
  %179 = vmatprep.subr.mxu0 0.0
  %180 = vmatpush1.msra.mxu0 0.0
  %181 = vmatprep.subr.mxu0 0.0
  %182 = vmatpush1.msra.mxu0 0.0
  %183 = vmatprep.subr.mxu0 0.0
  %184 = vmatpush1.msra.mxu0 0.0
  %185 = vmatprep.subr.mxu0 0.0
  %186 = vmatpush1.msra.mxu0 0.0
  %187 = vmatprep.subr.mxu0 0.0
  %188 = vmatpush1.msra.mxu0 0.0
  %189 = vmatprep.subr.mxu0 0.0
  %190 = vmatpush1.msra.mxu0 0.0
  %191 = vmatprep.subr.mxu0 0.0
  %192 = vmatpush1.msra.mxu0 0.0
  %193 = vmatprep.subr.mxu0 0.0
  %194 = vmatpush1.msra.mxu0 0.0
  %195 = vmatprep.subr.mxu0 0.0
  %196 = vmatpush1.msra.mxu0 0.0
  %197 = vmatprep.subr.mxu0 0.0
  %198 = vmatpush1.msra.mxu0 0.0
  %199 = vmatprep.subr.mxu0 0.0
  %200 = vmatpush1.msra.mxu0 0.0
  %201 = vmatprep.subr.mxu0 0.0
  %202 = vmatpush1.msra.mxu0 0.0
  %203 = vmatprep.mubr.f32.mxu0 0.0
  %204 = vmatmul.mubr.f32.gmra.mrb[0].mxu0 %v137
  %v205 = vpop.f32.mrb[0].mxu0
  %v206 = vadd.f32 %v133, %v205
  %v207 = vpop.f32.mrb[0].mxu0
  %208 = vdwg.mxu0
  %vm209 = vcmask 15360
  %210 = vst.msk [vmem:[%s5] sm:$0xff] %vm209, %v206
  // Predicated region
  $region22: #{tpu_custom_call.1} parent=0 // pred_check
    _
  $region23: #{tpu_custom_call.1} parent=0 // pred_check_branch
    %212 = sbr.rel (0) target = $region25
  $region24: #{tpu_custom_call.1} parent=0 // pred_region
    _
  $region25: #{tpu_custom_call.1} parent=0 // pred_fallthru
    _
  // Predicated region
  $region26: #{tpu_custom_call.1} parent=0 // pred_check
    _
  $region27: #{tpu_custom_call.1} parent=0 // pred_check_branch
    %214 = sbr.rel (0) target = $region29
  $region28: #{tpu_custom_call.1} parent=0 // pred_region
    _
  $region29: #{tpu_custom_call.1} parent=0 // pred_fallthru
    _

</llo_original>
